<compile_context>
chip_gen: v5e
topology: v5e:2x2
jax: 0.10.0
libtpu: 0.0.40
codegen_flags: <defaults>
</compile_context>

<pallas_src>
import functools
from dataclasses import dataclass

import jax
import jax.numpy as jnp
from jax.experimental import pallas as pl
from jax.experimental.pallas import tpu as pltpu


def _round_up(x, m):
    return ((x + m - 1) // m) * m


@dataclass(frozen=True)
class ResidualUnitsParams:
    """Lane-padded, pre-cast parameters for a (stack of) Residual_Units."""
    w1: jax.Array   # (N, Dp, Hp)  compute_dtype, (in, out) layout
    b1: jax.Array   # (N, 1,  Hp)  float32
    w2: jax.Array   # (N, Hp, Dp)  compute_dtype
    b2: jax.Array   # (N, 1,  Dp)  float32
    dim_stack: int  # D (unpadded)
    hidden: int     # H (unpadded)


def prepare_residual_units_params(layer_params, compute_dtype=jnp.bfloat16):
    """Pad feature dims to multiples of 128 and cast weights once (hoisted out
    of the per-call path).

    layer_params: sequence of (w1, b1, w2, b2) with
        w1: (D, H)   b1: (H,)   w2: (H, D)   b2: (D,)
    (weights already transposed to (in_features, out_features))."""
    D, H = layer_params[0][0].shape
    Dp, Hp = _round_up(D, 128), _round_up(H, 128)
    w1s, b1s, w2s, b2s = [], [], [], []
    for (w1, b1, w2, b2) in layer_params:
        w1s.append(jnp.pad(w1.astype(compute_dtype), ((0, Dp - D), (0, Hp - H))))
        w2s.append(jnp.pad(w2.astype(compute_dtype), ((0, Hp - H), (0, Dp - D))))
        b1s.append(jnp.pad(b1.astype(jnp.float32), (0, Hp - H)).reshape(1, Hp))
        b2s.append(jnp.pad(b2.astype(jnp.float32), (0, Dp - D)).reshape(1, Dp))
    return ResidualUnitsParams(
        w1=jnp.stack(w1s), b1=jnp.stack(b1s),
        w2=jnp.stack(w2s), b2=jnp.stack(b2s),
        dim_stack=D, hidden=H)


def _residual_units_kernel(x_ref, w1_ref, b1_ref, w2_ref, b2_ref, o_ref,
                           *, n_layers, compute_dtype):
    """One (TB, Dp) batch tile of a fused stack of n_layers residual units.

    Matmuls run on the MXU in `compute_dtype` with f32 accumulation; the
    elementwise tail (bias, residual, ReLU) stays in f32. The activation stays
    in VMEM across layers (no HBM round-trip between layers)."""
    x = x_ref[...].astype(jnp.float32)                            # (TB, Dp)
    for l in range(n_layers):                                     # static unroll
        h = jnp.dot(x.astype(compute_dtype), w1_ref[l],
                    preferred_element_type=jnp.float32)           # (TB, Hp)
        h = jnp.maximum(h + b1_ref[l], 0.0)
        y = jnp.dot(h.astype(compute_dtype), w2_ref[l],
                    preferred_element_type=jnp.float32)           # (TB, Dp)
        x = jnp.maximum(y + b2_ref[l] + x, 0.0)                   # residual + ReLU
    o_ref[...] = x.astype(o_ref.dtype)


def residual_units(x, params: ResidualUnitsParams, *, tile_b=None):
    """x: (B, D); params: ResidualUnitsParams (possibly a stack of N units).

    Returns (B, D) in x.dtype. When D % 128 == 0 and B is a multiple of the
    batch tile, no padding / slicing is performed around the kernel."""
    B, D = x.shape
    assert D == params.dim_stack, "x feature dim does not match parameters"
    N, Dp, Hp = params.w1.shape
    compute_dtype = params.w1.dtype
    cdt_bytes = params.w1.dtype.itemsize
    x_bytes = x.dtype.itemsize

    # ---- batch tile: bigger tiles for small feature dims, capped by a v7x-safe
    # per-TensorCore VMEM budget (weights are replicated per TC under
    # dimension_semantics=("parallel",), so size against 64 MiB, not 128). ----
    if tile_b is None:
        tile_b = 2048 if Dp <= 256 else (1024 if Dp <= 512 else 512)
    resident = N * (2 * Dp * Hp * cdt_bytes + (Hp + Dp) * 4)      # weights + biases
    per_row = (2 * Dp * x_bytes          # x tile (double-buffered)
               + 2 * Dp * x_bytes        # out tile (double-buffered)
               + Hp * 4                  # f32 intermediate h
               + (Hp + Dp) * cdt_bytes   # compute-dtype operand copies
               + Dp * 4)                 # f32 y temp
    budget = int(64 * 1024 * 1024 * 0.75)                         # v7x per-TC, headroom
    avail = budget - resident
    tb_cap = max(8, (avail // per_row) // 8 * 8) if avail > 0 else 8
    tb = max(8, min(_round_up(tile_b, 8), tb_cap, _round_up(B, 8)))

    # ---- fast path: only pad what actually needs padding ----
    Bp = _round_up(B, tb)
    needs_pad = (Bp != B) or (Dp != D)
    xp = jnp.pad(x, ((0, Bp - B), (0, Dp - D))) if needs_pad else x

    # ---- explicit VMEM limit (covers h + operand copies + streamed tiles) ----
    vmem_need = resident + tb * per_row
    vmem_limit = int(min(max(vmem_need * 1.25, 32 * 1024 * 1024),
                         128 * 1024 * 1024))

    w_bytes = (params.w1.size + params.w2.size) * cdt_bytes
    b_bytes = (params.b1.size + params.b2.size) * 4
    cost = pl.CostEstimate(
        flops=4 * N * Bp * Dp * Hp + N * (4 * Bp * Dp + 2 * Bp * Hp),
        transcendentals=0,
        bytes_accessed=2 * Bp * Dp * x_bytes + w_bytes + b_bytes,
    )

    kernel = functools.partial(_residual_units_kernel,
                               n_layers=N, compute_dtype=compute_dtype)

    def _call(weight_pipeline_mode):
        # Resident (constant index_map) operands; optional single-buffering.
        wkw = ({} if weight_pipeline_mode is None
               else dict(pipeline_mode=weight_pipeline_mode))
        return pl.pallas_call(
            kernel,
            out_shape=jax.ShapeDtypeStruct((Bp, Dp), x.dtype),
            grid=(Bp // tb,),
            in_specs=[
                pl.BlockSpec((tb, Dp), lambda i: (i, 0)),           # x: streamed
                pl.BlockSpec((N, Dp, Hp), lambda i: (0, 0, 0), **wkw),  # W1 resident
                pl.BlockSpec((N, 1, Hp), lambda i: (0, 0, 0), **wkw),   # b1 resident
                pl.BlockSpec((N, Hp, Dp), lambda i: (0, 0, 0), **wkw),  # W2 resident
                pl.BlockSpec((N, 1, Dp), lambda i: (0, 0, 0), **wkw),   # b2 resident
            ],
            out_specs=pl.BlockSpec((tb, Dp), lambda i: (i, 0)),
            compiler_params=pltpu.CompilerParams(
                # Independent batch tiles -> shard across v7x's 2 TensorCores.
                dimension_semantics=("parallel",),
                vmem_limit_bytes=vmem_limit,
            ),
            cost_estimate=cost,
        )

    args = (xp, params.w1, params.b1, params.w2, params.b2)
    try:
        out = _call(pl.Buffered(1))(*args)
    except Exception:
        # Older JAX without BlockSpec pipeline_mode: default double-buffering.
        out = _call(None)(*args)

    if needs_pad:
        out = out[:B, :D]
    return out


def reference_single(x, w1, b1, w2, b2):
    h = jnp.maximum(x @ w1 + b1, 0.0)
    return jnp.maximum(h @ w2 + b2 + x, 0.0)


if __name__ == "__main__":
    # Module hyperparameters (small, consistent with the forward pass).
    batch = 8
    dim_stack = 32     # input / output feature dim
    hidden_units = 64  # hidden dim of layer1

    key = jax.random.PRNGKey(0)
    kx, k1, k2, k3, k4 = jax.random.split(key, 5)

    x = jax.random.normal(kx, (batch, dim_stack), dtype=jnp.float32)

    # Deterministic parameter init (PyTorch nn.Linear-like uniform scale),
    # stored pre-transposed: (in_features, out_features).
    s1 = 1.0 / jnp.sqrt(dim_stack)
    s2 = 1.0 / jnp.sqrt(hidden_units)
    w1 = jax.random.uniform(k1, (dim_stack, hidden_units), jnp.float32, -s1, s1)
    b1 = jax.random.uniform(k2, (hidden_units,), jnp.float32, -s1, s1)
    w2 = jax.random.uniform(k3, (hidden_units, dim_stack), jnp.float32, -s2, s2)
    b2 = jax.random.uniform(k4, (dim_stack,), jnp.float32, -s2, s2)

    ref = reference_single(x, w1, b1, w2, b2)

    # Default path: bf16 matmuls, f32 accumulation / epilogue (looser check).
    p_bf16 = prepare_residual_units_params([(w1, b1, w2, b2)],
                                           compute_dtype=jnp.bfloat16)
    out_bf16 = jax.block_until_ready(residual_units(x, p_bf16))
    assert out_bf16.shape == (batch, dim_stack)
    assert jnp.allclose(out_bf16, ref, atol=1.5e-1, rtol=1.5e-1), "bf16 mismatch"

    # f32 matmul path: tight accuracy check.
    p_f32 = prepare_residual_units_params([(w1, b1, w2, b2)],
                                          compute_dtype=jnp.float32)
    out_f32 = jax.block_until_ready(residual_units(x, p_f32))
    assert out_f32.shape == (batch, dim_stack)
    assert jnp.allclose(out_f32, ref, atol=1e-5, rtol=1e-5), "f32 mismatch"

    # Fused 3-unit stack (how DeepCrossing actually uses this block): one
    # pallas_call, all layer weights resident, activation stays in VMEM.
    n_stack = 3
    kstack = jax.random.split(jax.random.PRNGKey(1), 4 * n_stack)
    layers = []
    for l in range(n_stack):
        kw1, kb1, kw2, kb2 = kstack[4 * l:4 * l + 4]
        layers.append((
            jax.random.uniform(kw1, (dim_stack, hidden_units), jnp.float32, -s1, s1),
            jax.random.uniform(kb1, (hidden_units,), jnp.float32, -s1, s1),
            jax.random.uniform(kw2, (hidden_units, dim_stack), jnp.float32, -s2, s2),
            jax.random.uniform(kb2, (dim_stack,), jnp.float32, -s2, s2),
        ))
    ref_stack = x
    for (w1_l, b1_l, w2_l, b2_l) in layers:
        ref_stack = reference_single(ref_stack, w1_l, b1_l, w2_l, b2_l)
    p_stack = prepare_residual_units_params(layers, compute_dtype=jnp.float32)
    out_stack = jax.block_until_ready(residual_units(x, p_stack))
    assert out_stack.shape == (batch, dim_stack)
    assert jnp.allclose(out_stack, ref_stack, atol=1e-4, rtol=1e-4), "stack mismatch"

    print("KERNEL_OK")
</pallas_src>

<mosaic_0001>
module attributes {stable_mosaic.version = 11 : i64} {
  func.func @_residual_units_kernel(%arg0: i32, %arg1: memref<8x128xf32, #tpu.memory_space<vmem>>, %arg2: memref<1x128x128xbf16, #tpu.memory_space<vmem>>, %arg3: memref<1x1x128xf32, #tpu.memory_space<vmem>>, %arg4: memref<1x128x128xbf16, #tpu.memory_space<vmem>>, %arg5: memref<1x1x128xf32, #tpu.memory_space<vmem>>, %arg6: memref<8x128xf32, #tpu.memory_space<vmem>>) attributes {dimension_semantics = [#tpu.dimension_semantics<parallel>], iteration_bounds = array<i64: 1>, scalar_prefetch = 0 : i64, scratch_operands = 0 : i64, tpu.core_type = #tpu.core_type<tc>, window_params = [{transform_indices = @transform_0, window_bounds = array<i64: 8, 128>}, {pipeline_mode = #tpu.pipeline_mode<synchronous>, transform_indices = @transform_1, window_bounds = array<i64: 1, 128, 128>}, {pipeline_mode = #tpu.pipeline_mode<synchronous>, transform_indices = @transform_2, window_bounds = array<i64: 1, 1, 128>}, {pipeline_mode = #tpu.pipeline_mode<synchronous>, transform_indices = @transform_3, window_bounds = array<i64: 1, 128, 128>}, {pipeline_mode = #tpu.pipeline_mode<synchronous>, transform_indices = @transform_4, window_bounds = array<i64: 1, 1, 128>}, {transform_indices = @transform_5, window_bounds = array<i64: 8, 128>}]} {
    %c0 = arith.constant 0 : index
    %c0_0 = arith.constant 0 : index
    %0 = vector.load %arg1[%c0, %c0_0] : memref<8x128xf32, #tpu.memory_space<vmem>>, vector<8x128xf32>
    %1 = arith.truncf %0 : vector<8x128xf32> to vector<8x128xbf16>
    %c0_1 = arith.constant 0 : index
    %c0_2 = arith.constant 0 : index
    %c0_3 = arith.constant 0 : index
    %2 = vector.load %arg2[%c0_1, %c0_2, %c0_3] : memref<1x128x128xbf16, #tpu.memory_space<vmem>>, vector<1x128x128xbf16>
    %3 = vector.shape_cast %2 : vector<1x128x128xbf16> to vector<128x128xbf16>
    %cst = arith.constant dense<0.000000e+00> : vector<8x128xf32>
    %4 = tpu.matmul %1, %3, %cst {dimension_numbers = #tpu.dot_dimension_numbers<[1], [0], [0], [1], [0, 0, 1, 1], [], []>} : vector<8x128xbf16>, vector<128x128xbf16>, vector<8x128xf32> -> vector<8x128xf32>
    %c0_4 = arith.constant 0 : index
    %c0_5 = arith.constant 0 : index
    %c0_6 = arith.constant 0 : index
    %5 = vector.load %arg3[%c0_4, %c0_5, %c0_6] : memref<1x1x128xf32, #tpu.memory_space<vmem>>, vector<1x1x128xf32>
    %6 = vector.shape_cast %5 : vector<1x1x128xf32> to vector<1x128xf32>
    %7 = vector.broadcast %6 : vector<1x128xf32> to vector<8x128xf32>
    %8 = arith.addf %4, %7 : vector<8x128xf32>
    %cst_7 = arith.constant 0.000000e+00 : f32
    %9 = vector.broadcast %cst_7 : f32 to vector<8x128xf32>
    %10 = arith.maximumf %8, %9 : vector<8x128xf32>
    %11 = arith.truncf %10 : vector<8x128xf32> to vector<8x128xbf16>
    %c0_8 = arith.constant 0 : index
    %c0_9 = arith.constant 0 : index
    %c0_10 = arith.constant 0 : index
    %12 = vector.load %arg4[%c0_8, %c0_9, %c0_10] : memref<1x128x128xbf16, #tpu.memory_space<vmem>>, vector<1x128x128xbf16>
    %13 = vector.shape_cast %12 : vector<1x128x128xbf16> to vector<128x128xbf16>
    %cst_11 = arith.constant dense<0.000000e+00> : vector<8x128xf32>
    %14 = tpu.matmul %11, %13, %cst_11 {dimension_numbers = #tpu.dot_dimension_numbers<[1], [0], [0], [1], [0, 0, 1, 1], [], []>} : vector<8x128xbf16>, vector<128x128xbf16>, vector<8x128xf32> -> vector<8x128xf32>
    %c0_12 = arith.constant 0 : index
    %c0_13 = arith.constant 0 : index
    %c0_14 = arith.constant 0 : index
    %15 = vector.load %arg5[%c0_12, %c0_13, %c0_14] : memref<1x1x128xf32, #tpu.memory_space<vmem>>, vector<1x1x128xf32>
    %16 = vector.shape_cast %15 : vector<1x1x128xf32> to vector<1x128xf32>
    %17 = vector.broadcast %16 : vector<1x128xf32> to vector<8x128xf32>
    %18 = arith.addf %14, %17 : vector<8x128xf32>
    %19 = arith.addf %18, %0 : vector<8x128xf32>
    %cst_15 = arith.constant 0.000000e+00 : f32
    %20 = vector.broadcast %cst_15 : f32 to vector<8x128xf32>
    %21 = arith.maximumf %19, %20 : vector<8x128xf32>
    %c0_16 = arith.constant 0 : index
    %c0_17 = arith.constant 0 : index
    %22 = vector.load %arg6[%c0_16, %c0_17] : memref<8x128xf32, #tpu.memory_space<vmem>>, vector<8x128xf32>
    tpu.vector_store %arg6[%c0_16, %c0_17], %21 {strides = array<i32>} : memref<8x128xf32, #tpu.memory_space<vmem>>, vector<8x128xf32>,
    return
  }
  func.func @transform_0(%arg0: i32) -> (i32, i32) {
    %c0_i32 = arith.constant 0 : i32
    %c0_i32_0 = arith.constant 0 : i32
    return %arg0, %c0_i32 : i32, i32
  }
  func.func @transform_1(%arg0: i32) -> (i32, i32, i32) {
    %c0_i32 = arith.constant 0 : i32
    %c0_i32_0 = arith.constant 0 : i32
    %c0_i32_1 = arith.constant 0 : i32
    %c0_i32_2 = arith.constant 0 : i32
    return %c0_i32, %c0_i32_0, %c0_i32_1 : i32, i32, i32
  }
  func.func @transform_2(%arg0: i32) -> (i32, i32, i32) {
    %c0_i32 = arith.constant 0 : i32
    %c0_i32_0 = arith.constant 0 : i32
    %c0_i32_1 = arith.constant 0 : i32
    %c0_i32_2 = arith.constant 0 : i32
    return %c0_i32, %c0_i32_0, %c0_i32_1 : i32, i32, i32
  }
  func.func @transform_3(%arg0: i32) -> (i32, i32, i32) {
    %c0_i32 = arith.constant 0 : i32
    %c0_i32_0 = arith.constant 0 : i32
    %c0_i32_1 = arith.constant 0 : i32
    %c0_i32_2 = arith.constant 0 : i32
    return %c0_i32, %c0_i32_0, %c0_i32_1 : i32, i32, i32
  }
  func.func @transform_4(%arg0: i32) -> (i32, i32, i32) {
    %c0_i32 = arith.constant 0 : i32
    %c0_i32_0 = arith.constant 0 : i32
    %c0_i32_1 = arith.constant 0 : i32
    %c0_i32_2 = arith.constant 0 : i32
    return %c0_i32, %c0_i32_0, %c0_i32_1 : i32, i32, i32
  }
  func.func @transform_5(%arg0: i32) -> (i32, i32) {
    %c0_i32 = arith.constant 0 : i32
    %c0_i32_0 = arith.constant 0 : i32
    return %arg0, %c0_i32 : i32, i32
  }
}

module attributes {stable_mosaic.version = 11 : i64} {
  func.func @_residual_units_kernel(%arg0: i32, %arg1: memref<8x128xf32, #tpu.memory_space<vmem>>, %arg2: memref<1x128x128xbf16, #tpu.memory_space<vmem>>, %arg3: memref<1x1x128xf32, #tpu.memory_space<vmem>>, %arg4: memref<1x128x128xbf16, #tpu.memory_space<vmem>>, %arg5: memref<1x1x128xf32, #tpu.memory_space<vmem>>, %arg6: memref<8x128xf32, #tpu.memory_space<vmem>>) attributes {dimension_semantics = [#tpu.dimension_semantics<parallel>], iteration_bounds = array<i64: 1>, scalar_prefetch = 0 : i64, scratch_operands = 0 : i64, tpu.core_type = #tpu.core_type<tc>, window_params = [{transform_indices = @transform_0, window_bounds = array<i64: 8, 128>}, {pipeline_mode = #tpu.pipeline_mode<synchronous>, transform_indices = @transform_1, window_bounds = array<i64: 1, 128, 128>}, {pipeline_mode = #tpu.pipeline_mode<synchronous>, transform_indices = @transform_2, window_bounds = array<i64: 1, 1, 128>}, {pipeline_mode = #tpu.pipeline_mode<synchronous>, transform_indices = @transform_3, window_bounds = array<i64: 1, 128, 128>}, {pipeline_mode = #tpu.pipeline_mode<synchronous>, transform_indices = @transform_4, window_bounds = array<i64: 1, 1, 128>}, {transform_indices = @transform_5, window_bounds = array<i64: 8, 128>}]} {
    %c0 = arith.constant 0 : index
    %c0_0 = arith.constant 0 : index
    %0 = vector.load %arg1[%c0, %c0_0] : memref<8x128xf32, #tpu.memory_space<vmem>>, vector<8x128xf32>
    %1 = arith.truncf %0 : vector<8x128xf32> to vector<8x128xbf16>
    %c0_1 = arith.constant 0 : index
    %c0_2 = arith.constant 0 : index
    %c0_3 = arith.constant 0 : index
    %2 = vector.load %arg2[%c0_1, %c0_2, %c0_3] : memref<1x128x128xbf16, #tpu.memory_space<vmem>>, vector<1x128x128xbf16>
    %3 = vector.shape_cast %2 : vector<1x128x128xbf16> to vector<128x128xbf16>
    %cst = arith.constant dense<0.000000e+00> : vector<8x128xf32>
    %4 = tpu.matmul %1, %3, %cst {dimension_numbers = #tpu.dot_dimension_numbers<[1], [0], [0], [1], [0, 0, 1, 1], [], []>} : vector<8x128xbf16>, vector<128x128xbf16>, vector<8x128xf32> -> vector<8x128xf32>
    %c0_4 = arith.constant 0 : index
    %c0_5 = arith.constant 0 : index
    %c0_6 = arith.constant 0 : index
    %5 = vector.load %arg3[%c0_4, %c0_5, %c0_6] : memref<1x1x128xf32, #tpu.memory_space<vmem>>, vector<1x1x128xf32>
    %6 = vector.shape_cast %5 : vector<1x1x128xf32> to vector<1x128xf32>
    %7 = vector.broadcast %6 : vector<1x128xf32> to vector<8x128xf32>
    %8 = arith.addf %4, %7 : vector<8x128xf32>
    %cst_7 = arith.constant 0.000000e+00 : f32
    %9 = vector.broadcast %cst_7 : f32 to vector<8x128xf32>
    %10 = arith.maximumf %8, %9 : vector<8x128xf32>
    %11 = arith.truncf %10 : vector<8x128xf32> to vector<8x128xbf16>
    %c0_8 = arith.constant 0 : index
    %c0_9 = arith.constant 0 : index
    %c0_10 = arith.constant 0 : index
    %12 = vector.load %arg4[%c0_8, %c0_9, %c0_10] : memref<1x128x128xbf16, #tpu.memory_space<vmem>>, vector<1x128x128xbf16>
    %13 = vector.shape_cast %12 : vector<1x128x128xbf16> to vector<128x128xbf16>
    %cst_11 = arith.constant dense<0.000000e+00> : vector<8x128xf32>
    %14 = tpu.matmul %11, %13, %cst_11 {dimension_numbers = #tpu.dot_dimension_numbers<[1], [0], [0], [1], [0, 0, 1, 1], [], []>} : vector<8x128xbf16>, vector<128x128xbf16>, vector<8x128xf32> -> vector<8x128xf32>
    %c0_12 = arith.constant 0 : index
    %c0_13 = arith.constant 0 : index
    %c0_14 = arith.constant 0 : index
    %15 = vector.load %arg5[%c0_12, %c0_13, %c0_14] : memref<1x1x128xf32, #tpu.memory_space<vmem>>, vector<1x1x128xf32>
    %16 = vector.shape_cast %15 : vector<1x1x128xf32> to vector<1x128xf32>
    %17 = vector.broadcast %16 : vector<1x128xf32> to vector<8x128xf32>
    %18 = arith.addf %14, %17 : vector<8x128xf32>
    %19 = arith.addf %18, %0 : vector<8x128xf32>
    %cst_15 = arith.constant 0.000000e+00 : f32
    %20 = vector.broadcast %cst_15 : f32 to vector<8x128xf32>
    %21 = arith.maximumf %19, %20 : vector<8x128xf32>
    %c0_16 = arith.constant 0 : index
    %c0_17 = arith.constant 0 : index
    %22 = vector.load %arg6[%c0_16, %c0_17] : memref<8x128xf32, #tpu.memory_space<vmem>>, vector<8x128xf32>
    tpu.vector_store %arg6[%c0_16, %c0_17], %21 {strides = array<i32>} : memref<8x128xf32, #tpu.memory_space<vmem>>, vector<8x128xf32>,
    return
  }
  func.func @transform_0(%arg0: i32) -> (i32, i32) {
    %c0_i32 = arith.constant 0 : i32
    %c0_i32_0 = arith.constant 0 : i32
    return %arg0, %c0_i32 : i32, i32
  }
  func.func @transform_1(%arg0: i32) -> (i32, i32, i32) {
    %c0_i32 = arith.constant 0 : i32
    %c0_i32_0 = arith.constant 0 : i32
    %c0_i32_1 = arith.constant 0 : i32
    %c0_i32_2 = arith.constant 0 : i32
    return %c0_i32, %c0_i32_0, %c0_i32_1 : i32, i32, i32
  }
  func.func @transform_2(%arg0: i32) -> (i32, i32, i32) {
    %c0_i32 = arith.constant 0 : i32
    %c0_i32_0 = arith.constant 0 : i32
    %c0_i32_1 = arith.constant 0 : i32
    %c0_i32_2 = arith.constant 0 : i32
    return %c0_i32, %c0_i32_0, %c0_i32_1 : i32, i32, i32
  }
  func.func @transform_3(%arg0: i32) -> (i32, i32, i32) {
    %c0_i32 = arith.constant 0 : i32
    %c0_i32_0 = arith.constant 0 : i32
    %c0_i32_1 = arith.constant 0 : i32
    %c0_i32_2 = arith.constant 0 : i32
    return %c0_i32, %c0_i32_0, %c0_i32_1 : i32, i32, i32
  }
  func.func @transform_4(%arg0: i32) -> (i32, i32, i32) {
    %c0_i32 = arith.constant 0 : i32
    %c0_i32_0 = arith.constant 0 : i32
    %c0_i32_1 = arith.constant 0 : i32
    %c0_i32_2 = arith.constant 0 : i32
    return %c0_i32, %c0_i32_0, %c0_i32_1 : i32, i32, i32
  }
  func.func @transform_5(%arg0: i32) -> (i32, i32) {
    %c0_i32 = arith.constant 0 : i32
    %c0_i32_0 = arith.constant 0 : i32
    return %arg0, %c0_i32 : i32, i32
  }
}

</mosaic_0001>

<llo_original>
// kernel: tpu_custom_call.1
$region0: #{tpu_custom_call.1}
  #allocation0 [shape = 'u32[]', space=smem, size = 0x4, offset = 0x4, fixed_abs, tag = 'smem constant byte address 0x4 - core index']
  #allocation1 [shape = 'u32[72,128]{1,0:T(1,128)}', space=vmem, size = 0x9000, scoped, tag = 'internal scratch']
  %s0 = inlined_call_operand.hbm [shape: f32[8,128], index: 0, kind: input, shape index: {}]
  %s1 = inlined_call_operand.hbm [shape: bf16[1,128,128], index: 1, kind: input, shape index: {}]
  %s2 = inlined_call_operand.vmem [shape: f32[1,1,128], index: 2, kind: input, shape index: {}]
  %s3 = inlined_call_operand.hbm [shape: bf16[1,128,128], index: 3, kind: input, shape index: {}]
  %s4 = inlined_call_operand.vmem [shape: f32[1,1,128], index: 4, kind: input, shape index: {}]
  %s5 = inlined_call_operand.hbm [shape: f32[8,128], index: 5, kind: output, shape index: {}]
  %s6 = sld [smem:[#allocation0]]
  $region42: #{tpu_custom_call.1} parent=0
    _
  %s8 = ssub.s32 1, %s6
  %s9 = scalar_select 0, %s8, %s6
  $region1: #{tpu_custom_call.1} parent=0
    #allocation2 [shape = 'u8[4096]{0}', space=vmem, size = 0x1000, scoped, tag = 'input window, operand 0, single buffered']
    #allocation3 [shape = 's32[1]{0}', space=sflag, size = 0x4, scoped, tag = 'scoped memory for tpu_custom_call.1']
    #allocation4 [shape = 's32[1]{0}', space=sflag, size = 0x4, scoped, tag = 'scoped memory for tpu_custom_call.1']
    #allocation5 [shape = 'u8[32768]{0}', space=vmem, size = 0x8000, scoped, tag = 'input window, operand 1, single buffered']
    #allocation6 [shape = 's32[1]{0}', space=sflag, size = 0x4, scoped, tag = 'scoped memory for tpu_custom_call.1']
    #allocation7 [shape = 'u8[32768]{0}', space=vmem, size = 0x8000, scoped, tag = 'input window, operand 3, single buffered']
    #allocation8 [shape = 'u8[4096]{0}', space=vmem, size = 0x1000, scoped, tag = 'output window, operand 0, single buffered']
    %10 = vsyncpa [#allocation3], 0
    %11 = vsyncpa [#allocation6], 0
    %12 = vsyncpa [#allocation4], 0
    // Predicated region
    $region2: #{tpu_custom_call.1} parent=1 // pred_check
      _
    $region3: #{tpu_custom_call.1} parent=1 // pred_check_branch
      %14 = sbr.rel (0) target = $region5
    $region4: #{tpu_custom_call.1} parent=1 // pred_region
      %16 = vsyncadd [#allocation3], 0
      %s18 = sshll.u32 %s0, 4
      %s19 = int_to_ptr.hbm [resolvable:$true] %s18
      %s20 = sshll.u32 [#allocation2], 4
      %s21 = int_to_ptr.vmem [resolvable:$true] %s20
      %23 = dma.hbm_to_vmem [thread:$0]  %s19, 128, %s21, [#allocation3]
    $region5: #{tpu_custom_call.1} parent=1 // pred_fallthru
      _
    // Predicated region
    $region6: #{tpu_custom_call.1} parent=1 // pred_check
      _
    $region7: #{tpu_custom_call.1} parent=1 // pred_check_branch
      %25 = sbr.rel (0) target = $region9
    $region8: #{tpu_custom_call.1} parent=1 // pred_region
      %27 = vsyncadd [#allocation6], 0
      %s28 = sshll.u32 %s1, 4
      %s29 = int_to_ptr.hbm [resolvable:$true] %s28
      %s30 = sshll.u32 [#allocation5], 4
      %s31 = int_to_ptr.vmem [resolvable:$true] %s30
      %36 = dma.hbm_to_vmem [thread:$0]  %s29, 1024, %s31, [#allocation6], 64, 64, 4
    $region9: #{tpu_custom_call.1} parent=1 // pred_fallthru
      _
    // Predicated region
    $region10: #{tpu_custom_call.1} parent=1 // pred_check
      _
    $region11: #{tpu_custom_call.1} parent=1 // pred_check_branch
      %38 = sbr.rel (0) target = $region13
    $region12: #{tpu_custom_call.1} parent=1 // pred_region
      _
    $region13: #{tpu_custom_call.1} parent=1 // pred_fallthru
      _
    // Predicated region
    $region14: #{tpu_custom_call.1} parent=1 // pred_check
      _
    $region15: #{tpu_custom_call.1} parent=1 // pred_check_branch
      %40 = sbr.rel (0) target = $region17
    $region16: #{tpu_custom_call.1} parent=1 // pred_region
      %42 = vsyncadd [#allocation6], 0
      %s43 = sshll.u32 %s3, 4
      %s44 = int_to_ptr.hbm [resolvable:$true] %s43
      %s45 = sshll.u32 [#allocation7], 4
      %s46 = int_to_ptr.vmem [resolvable:$true] %s45
      %51 = dma.hbm_to_vmem [thread:$0]  %s44, 1024, %s46, [#allocation6], 64, 64, 4
    $region17: #{tpu_custom_call.1} parent=1 // pred_fallthru
      _
    // Predicated region
    $region18: #{tpu_custom_call.1} parent=1 // pred_check
      _
    $region19: #{tpu_custom_call.1} parent=1 // pred_check_branch
      %53 = sbr.rel (0) target = $region21
    $region20: #{tpu_custom_call.1} parent=1 // pred_region
      _
    $region21: #{tpu_custom_call.1} parent=1 // pred_fallthru
      _
    // Predicated region
    $region22: #{tpu_custom_call.1} parent=1 // pred_check
      _
    $region23: #{tpu_custom_call.1} parent=1 // pred_check_branch
      %55 = sbr.rel (0) target = $region25
    $region24: #{tpu_custom_call.1} parent=1 // pred_region
      %57 = dma.done [#allocation3], 128
    $region25: #{tpu_custom_call.1} parent=1 // pred_fallthru
      _
    // Predicated region
    $region26: #{tpu_custom_call.1} parent=1 // pred_check
      _
    $region27: #{tpu_custom_call.1} parent=1 // pred_check_branch
      %59 = sbr.rel (0) target = $region29
    $region28: #{tpu_custom_call.1} parent=1 // pred_region
      %61 = dma.done [#allocation6], 1024
    $region29: #{tpu_custom_call.1} parent=1 // pred_fallthru
      _
    // Predicated region
    $region30: #{tpu_custom_call.1} parent=1 // pred_check
      _
    $region31: #{tpu_custom_call.1} parent=1 // pred_check_branch
      %63 = sbr.rel (0) target = $region33
    $region32: #{tpu_custom_call.1} parent=1 // pred_region
      %65 = dma.done [#allocation6], 1024
    $region33: #{tpu_custom_call.1} parent=1 // pred_fallthru
      _
    %v66 = vld [vmem:[#allocation2] sm:$0xff]
    %v67 = vpack.c.bf16 %v66, %v66
    %v68 = vld [vmem:[#allocation5] sm:$0xf]
    %v69 = vld [vmem:[#allocation5 + $0x4] sm:$0xf]
    %v70 = vld [vmem:[#allocation5 + $0x8] sm:$0xf]
    %v71 = vld [vmem:[#allocation5 + $0xc] sm:$0xf]
    %v72 = vld [vmem:[#allocation5 + $0x10] sm:$0xf]
    %v73 = vld [vmem:[#allocation5 + $0x14] sm:$0xf]
    %v74 = vld [vmem:[#allocation5 + $0x18] sm:$0xf]
    %v75 = vld [vmem:[#allocation5 + $0x1c] sm:$0xf]
    %v76 = vld [vmem:[#allocation5 + $0x20] sm:$0xf]
    %v77 = vld [vmem:[#allocation5 + $0x24] sm:$0xf]
    %v78 = vld [vmem:[#allocation5 + $0x28] sm:$0xf]
    %v79 = vld [vmem:[#allocation5 + $0x2c] sm:$0xf]
    %v80 = vld [vmem:[#allocation5 + $0x30] sm:$0xf]
    %v81 = vld [vmem:[#allocation5 + $0x34] sm:$0xf]
    %v82 = vld [vmem:[#allocation5 + $0x38] sm:$0xf]
    %v83 = vld [vmem:[#allocation5 + $0x3c] sm:$0xf]
    %v84 = vld [vmem:[%s2] sm:$0x1]
    %v86 = vperm.slane %v84, 0
    %v104 = vunpack.c.l.b16 %v68
    %v105 = vunpack.c.l.b16 %v69
    %v106 = vunpack.c.l.b16 %v70
    %v107 = vunpack.c.l.b16 %v71
    %v108 = vunpack.c.l.b16 %v72
    %v109 = vunpack.c.l.b16 %v73
    %v110 = vunpack.c.l.b16 %v74
    %v111 = vunpack.c.l.b16 %v75
    %v112 = vunpack.c.l.b16 %v76
    %v113 = vunpack.c.l.b16 %v77
    %v114 = vunpack.c.l.b16 %v78
    %v115 = vunpack.c.l.b16 %v79
    %v116 = vunpack.c.l.b16 %v80
    %v117 = vunpack.c.l.b16 %v81
    %v118 = vunpack.c.l.b16 %v82
    %v119 = vunpack.c.l.b16 %v83
    %v120 = vpack.c.b16 %v105, %v104
    %v121 = vpack.c.b16 %v107, %v106
    %v122 = vpack.c.b16 %v109, %v108
    %v123 = vpack.c.b16 %v111, %v110
    %v124 = vpack.c.b16 %v113, %v112
    %v125 = vpack.c.b16 %v115, %v114
    %v126 = vpack.c.b16 %v117, %v116
    %v127 = vpack.c.b16 %v119, %v118
    %136 = vmatpush.bf16.msra.mxu0 %v127
    %137 = vmatpush.bf16.msra.mxu0 %v126
    %138 = vmatpush.bf16.msra.mxu0 %v125
    %139 = vmatpush.bf16.msra.mxu0 %v124
    %140 = vmatpush.bf16.msra.mxu0 %v123
    %141 = vmatpush.bf16.msra.mxu0 %v122
    %142 = vmatpush.bf16.msra.mxu0 %v121
    %143 = vmatpush.bf16.msra.mxu0 %v120
    %144 = vmatmul.bf16.gmra.mxu0 %v67
    %v145 = vpop.f32.mrf.mxu0
    %v146 = vadd.f32 %v86, %v145
    %v147 = vpop.f32.mrf.mxu0
    %148 = vdwg.mxu0
    %v149 = vmax.f32 %v146, 0.0
    %v150 = vpack.c.bf16 %v149, %v149
    %v151 = vld [vmem:[#allocation7] sm:$0xf]
    %v152 = vld [vmem:[#allocation7 + $0x4] sm:$0xf]
    %v153 = vld [vmem:[#allocation7 + $0x8] sm:$0xf]
    %v154 = vld [vmem:[#allocation7 + $0xc] sm:$0xf]
    %v155 = vld [vmem:[#allocation7 + $0x10] sm:$0xf]
    %v156 = vld [vmem:[#allocation7 + $0x14] sm:$0xf]
    %v157 = vld [vmem:[#allocation7 + $0x18] sm:$0xf]
    %v158 = vld [vmem:[#allocation7 + $0x1c] sm:$0xf]
    %v159 = vld [vmem:[#allocation7 + $0x20] sm:$0xf]
    %v160 = vld [vmem:[#allocation7 + $0x24] sm:$0xf]
    %v161 = vld [vmem:[#allocation7 + $0x28] sm:$0xf]
    %v162 = vld [vmem:[#allocation7 + $0x2c] sm:$0xf]
    %v163 = vld [vmem:[#allocation7 + $0x30] sm:$0xf]
    %v164 = vld [vmem:[#allocation7 + $0x34] sm:$0xf]
    %v165 = vld [vmem:[#allocation7 + $0x38] sm:$0xf]
    %v166 = vld [vmem:[#allocation7 + $0x3c] sm:$0xf]
    %v167 = vld [vmem:[%s4] sm:$0x1]
    %v169 = vperm.slane %v167, 0
    %v187 = vunpack.c.l.b16 %v151
    %v188 = vunpack.c.l.b16 %v152
    %v189 = vunpack.c.l.b16 %v153
    %v190 = vunpack.c.l.b16 %v154
    %v191 = vunpack.c.l.b16 %v155
    %v192 = vunpack.c.l.b16 %v156
    %v193 = vunpack.c.l.b16 %v157
    %v194 = vunpack.c.l.b16 %v158
    %v195 = vunpack.c.l.b16 %v159
    %v196 = vunpack.c.l.b16 %v160
    %v197 = vunpack.c.l.b16 %v161
    %v198 = vunpack.c.l.b16 %v162
    %v199 = vunpack.c.l.b16 %v163
    %v200 = vunpack.c.l.b16 %v164
    %v201 = vunpack.c.l.b16 %v165
    %v202 = vunpack.c.l.b16 %v166
    %v203 = vpack.c.b16 %v188, %v187
    %v204 = vpack.c.b16 %v190, %v189
    %v205 = vpack.c.b16 %v192, %v191
    %v206 = vpack.c.b16 %v194, %v193
    %v207 = vpack.c.b16 %v196, %v195
    %v208 = vpack.c.b16 %v198, %v197
    %v209 = vpack.c.b16 %v200, %v199
    %v210 = vpack.c.b16 %v202, %v201
    %219 = vmatpush.bf16.msra.mxu0 %v210
    %220 = vmatpush.bf16.msra.mxu0 %v209
    %221 = vmatpush.bf16.msra.mxu0 %v208
    %222 = vmatpush.bf16.msra.mxu0 %v207
    %223 = vmatpush.bf16.msra.mxu0 %v206
    %224 = vmatpush.bf16.msra.mxu0 %v205
    %225 = vmatpush.bf16.msra.mxu0 %v204
    %226 = vmatpush.bf16.msra.mxu0 %v203
    %227 = vmatmul.bf16.gmra.mxu0 %v150
    %v228 = vpop.f32.mrf.mxu0
    %v229 = vadd.f32 %v169, %v228
    %v230 = vpop.f32.mrf.mxu0
    %231 = vdwg.mxu0
    %v232 = vadd.f32 %v229, %v66
    %v233 = vmax.f32 %v232, 0.0
    %234 = vst [vmem:[#allocation8] sm:$0xff] %v233
    // Predicated region
    $region34: #{tpu_custom_call.1} parent=1 // pred_check
      _
    $region35: #{tpu_custom_call.1} parent=1 // pred_check_branch
      %236 = sbr.rel (0) target = $region37
    $region36: #{tpu_custom_call.1} parent=1 // pred_region
      %238 = vsyncadd [#allocation4], 0
      %s240 = sshll.u32 [#allocation8], 4
      %s241 = int_to_ptr.vmem [resolvable:$true] %s240
      %s242 = sshll.u32 %s5, 4
      %s243 = int_to_ptr.hbm [resolvable:$true] %s242
      %245 = dma.vmem_to_hbm [thread:$0]  %s241, 128, %s243, [#allocation4]
    $region37: #{tpu_custom_call.1} parent=1 // pred_fallthru
      _
    // Predicated region
    $region38: #{tpu_custom_call.1} parent=1 // pred_check
      _
    $region39: #{tpu_custom_call.1} parent=1 // pred_check_branch
      %247 = sbr.rel (0) target = $region41
    $region40: #{tpu_custom_call.1} parent=1 // pred_region
      %249 = dma.done [#allocation4], 128
    $region41: #{tpu_custom_call.1} parent=1 // pred_fallthru
      _
    %250 = vsyncpa [#allocation3], 1
    %251 = vsyncpa [#allocation6], 1
    %252 = vsyncpa [#allocation4], 1

// kernel: tpu_custom_call.1
$region0: #{tpu_custom_call.1}
  #allocation0 [shape = 'u32[]', space=smem, size = 0x4, offset = 0x4, fixed_abs, tag = 'smem constant byte address 0x4 - core index']
  #allocation1 [shape = 'u32[72,128]{1,0:T(1,128)}', space=vmem, size = 0x9000, scoped, tag = 'internal scratch']
  %s0 = inlined_call_operand.hbm [shape: f32[8,128], index: 0, kind: input, shape index: {}]
  %s1 = inlined_call_operand.hbm [shape: bf16[1,128,128], index: 1, kind: input, shape index: {}]
  %s2 = inlined_call_operand.vmem [shape: f32[1,1,128], index: 2, kind: input, shape index: {}]
  %s3 = inlined_call_operand.hbm [shape: bf16[1,128,128], index: 3, kind: input, shape index: {}]
  %s4 = inlined_call_operand.vmem [shape: f32[1,1,128], index: 4, kind: input, shape index: {}]
  %s5 = inlined_call_operand.hbm [shape: f32[8,128], index: 5, kind: output, shape index: {}]
  %s6 = sld [smem:[#allocation0]]
  $region42: #{tpu_custom_call.1} parent=0
    _
  %s8 = ssub.s32 1, %s6
  %s9 = scalar_select 0, %s8, %s6
  $region1: #{tpu_custom_call.1} parent=0
    #allocation2 [shape = 'u8[4096]{0}', space=vmem, size = 0x1000, scoped, tag = 'input window, operand 0, single buffered']
    #allocation3 [shape = 's32[1]{0}', space=sflag, size = 0x4, scoped, tag = 'scoped memory for tpu_custom_call.1']
    #allocation4 [shape = 's32[1]{0}', space=sflag, size = 0x4, scoped, tag = 'scoped memory for tpu_custom_call.1']
    #allocation5 [shape = 'u8[32768]{0}', space=vmem, size = 0x8000, scoped, tag = 'input window, operand 1, single buffered']
    #allocation6 [shape = 's32[1]{0}', space=sflag, size = 0x4, scoped, tag = 'scoped memory for tpu_custom_call.1']
    #allocation7 [shape = 'u8[32768]{0}', space=vmem, size = 0x8000, scoped, tag = 'input window, operand 3, single buffered']
    #allocation8 [shape = 'u8[4096]{0}', space=vmem, size = 0x1000, scoped, tag = 'output window, operand 0, single buffered']
    %10 = vsyncpa [#allocation3], 0
    %11 = vsyncpa [#allocation6], 0
    %12 = vsyncpa [#allocation4], 0
    // Predicated region
    $region2: #{tpu_custom_call.1} parent=1 // pred_check
      _
    $region3: #{tpu_custom_call.1} parent=1 // pred_check_branch
      %14 = sbr.rel (0) target = $region5
    $region4: #{tpu_custom_call.1} parent=1 // pred_region
      %16 = vsyncadd [#allocation3], 0
      %s18 = sshll.u32 %s0, 4
      %s19 = int_to_ptr.hbm [resolvable:$true] %s18
      %s20 = sshll.u32 [#allocation2], 4
      %s21 = int_to_ptr.vmem [resolvable:$true] %s20
      %23 = dma.hbm_to_vmem [thread:$0]  %s19, 128, %s21, [#allocation3]
    $region5: #{tpu_custom_call.1} parent=1 // pred_fallthru
      _
    // Predicated region
    $region6: #{tpu_custom_call.1} parent=1 // pred_check
      _
    $region7: #{tpu_custom_call.1} parent=1 // pred_check_branch
      %25 = sbr.rel (0) target = $region9
    $region8: #{tpu_custom_call.1} parent=1 // pred_region
      %27 = vsyncadd [#allocation6], 0
      %s28 = sshll.u32 %s1, 4
      %s29 = int_to_ptr.hbm [resolvable:$true] %s28
      %s30 = sshll.u32 [#allocation5], 4
      %s31 = int_to_ptr.vmem [resolvable:$true] %s30
      %36 = dma.hbm_to_vmem [thread:$0]  %s29, 1024, %s31, [#allocation6], 64, 64, 4
    $region9: #{tpu_custom_call.1} parent=1 // pred_fallthru
      _
    // Predicated region
    $region10: #{tpu_custom_call.1} parent=1 // pred_check
      _
    $region11: #{tpu_custom_call.1} parent=1 // pred_check_branch
      %38 = sbr.rel (0) target = $region13
    $region12: #{tpu_custom_call.1} parent=1 // pred_region
      _
    $region13: #{tpu_custom_call.1} parent=1 // pred_fallthru
      _
    // Predicated region
    $region14: #{tpu_custom_call.1} parent=1 // pred_check
      _
    $region15: #{tpu_custom_call.1} parent=1 // pred_check_branch
      %40 = sbr.rel (0) target = $region17
    $region16: #{tpu_custom_call.1} parent=1 // pred_region
      %42 = vsyncadd [#allocation6], 0
      %s43 = sshll.u32 %s3, 4
      %s44 = int_to_ptr.hbm [resolvable:$true] %s43
      %s45 = sshll.u32 [#allocation7], 4
      %s46 = int_to_ptr.vmem [resolvable:$true] %s45
      %51 = dma.hbm_to_vmem [thread:$0]  %s44, 1024, %s46, [#allocation6], 64, 64, 4
    $region17: #{tpu_custom_call.1} parent=1 // pred_fallthru
      _
    // Predicated region
    $region18: #{tpu_custom_call.1} parent=1 // pred_check
      _
    $region19: #{tpu_custom_call.1} parent=1 // pred_check_branch
      %53 = sbr.rel (0) target = $region21
    $region20: #{tpu_custom_call.1} parent=1 // pred_region
      _
    $region21: #{tpu_custom_call.1} parent=1 // pred_fallthru
      _
    // Predicated region
    $region22: #{tpu_custom_call.1} parent=1 // pred_check
      _
    $region23: #{tpu_custom_call.1} parent=1 // pred_check_branch
      %55 = sbr.rel (0) target = $region25
    $region24: #{tpu_custom_call.1} parent=1 // pred_region
      %57 = dma.done [#allocation3], 128
    $region25: #{tpu_custom_call.1} parent=1 // pred_fallthru
      _
    // Predicated region
    $region26: #{tpu_custom_call.1} parent=1 // pred_check
      _
    $region27: #{tpu_custom_call.1} parent=1 // pred_check_branch
      %59 = sbr.rel (0) target = $region29
    $region28: #{tpu_custom_call.1} parent=1 // pred_region
      %61 = dma.done [#allocation6], 1024
    $region29: #{tpu_custom_call.1} parent=1 // pred_fallthru
      _
    // Predicated region
    $region30: #{tpu_custom_call.1} parent=1 // pred_check
      _
    $region31: #{tpu_custom_call.1} parent=1 // pred_check_branch
      %63 = sbr.rel (0) target = $region33
    $region32: #{tpu_custom_call.1} parent=1 // pred_region
      %65 = dma.done [#allocation6], 1024
    $region33: #{tpu_custom_call.1} parent=1 // pred_fallthru
      _
    %v66 = vld [vmem:[#allocation2] sm:$0xff]
    %v67 = vpack.c.bf16 %v66, %v66
    %v68 = vld [vmem:[#allocation5] sm:$0xf]
    %v69 = vld [vmem:[#allocation5 + $0x4] sm:$0xf]
    %v70 = vld [vmem:[#allocation5 + $0x8] sm:$0xf]
    %v71 = vld [vmem:[#allocation5 + $0xc] sm:$0xf]
    %v72 = vld [vmem:[#allocation5 + $0x10] sm:$0xf]
    %v73 = vld [vmem:[#allocation5 + $0x14] sm:$0xf]
    %v74 = vld [vmem:[#allocation5 + $0x18] sm:$0xf]
    %v75 = vld [vmem:[#allocation5 + $0x1c] sm:$0xf]
    %v76 = vld [vmem:[#allocation5 + $0x20] sm:$0xf]
    %v77 = vld [vmem:[#allocation5 + $0x24] sm:$0xf]
    %v78 = vld [vmem:[#allocation5 + $0x28] sm:$0xf]
    %v79 = vld [vmem:[#allocation5 + $0x2c] sm:$0xf]
    %v80 = vld [vmem:[#allocation5 + $0x30] sm:$0xf]
    %v81 = vld [vmem:[#allocation5 + $0x34] sm:$0xf]
    %v82 = vld [vmem:[#allocation5 + $0x38] sm:$0xf]
    %v83 = vld [vmem:[#allocation5 + $0x3c] sm:$0xf]
    %v84 = vld [vmem:[%s2] sm:$0x1]
    %v86 = vperm.slane %v84, 0
    %v104 = vunpack.c.l.b16 %v68
    %v105 = vunpack.c.l.b16 %v69
    %v106 = vunpack.c.l.b16 %v70
    %v107 = vunpack.c.l.b16 %v71
    %v108 = vunpack.c.l.b16 %v72
    %v109 = vunpack.c.l.b16 %v73
    %v110 = vunpack.c.l.b16 %v74
    %v111 = vunpack.c.l.b16 %v75
    %v112 = vunpack.c.l.b16 %v76
    %v113 = vunpack.c.l.b16 %v77
    %v114 = vunpack.c.l.b16 %v78
    %v115 = vunpack.c.l.b16 %v79
    %v116 = vunpack.c.l.b16 %v80
    %v117 = vunpack.c.l.b16 %v81
    %v118 = vunpack.c.l.b16 %v82
    %v119 = vunpack.c.l.b16 %v83
    %v120 = vpack.c.b16 %v105, %v104
    %v121 = vpack.c.b16 %v107, %v106
    %v122 = vpack.c.b16 %v109, %v108
    %v123 = vpack.c.b16 %v111, %v110
    %v124 = vpack.c.b16 %v113, %v112
    %v125 = vpack.c.b16 %v115, %v114
    %v126 = vpack.c.b16 %v117, %v116
    %v127 = vpack.c.b16 %v119, %v118
    %136 = vmatpush.bf16.msra.mxu0 %v127
    %137 = vmatpush.bf16.msra.mxu0 %v126
    %138 = vmatpush.bf16.msra.mxu0 %v125
    %139 = vmatpush.bf16.msra.mxu0 %v124
    %140 = vmatpush.bf16.msra.mxu0 %v123
    %141 = vmatpush.bf16.msra.mxu0 %v122
    %142 = vmatpush.bf16.msra.mxu0 %v121
    %143 = vmatpush.bf16.msra.mxu0 %v120
    %144 = vmatmul.bf16.gmra.mxu0 %v67
    %v145 = vpop.f32.mrf.mxu0
    %v146 = vadd.f32 %v86, %v145
    %v147 = vpop.f32.mrf.mxu0
    %148 = vdwg.mxu0
    %v149 = vmax.f32 %v146, 0.0
    %v150 = vpack.c.bf16 %v149, %v149
    %v151 = vld [vmem:[#allocation7] sm:$0xf]
    %v152 = vld [vmem:[#allocation7 + $0x4] sm:$0xf]
    %v153 = vld [vmem:[#allocation7 + $0x8] sm:$0xf]
    %v154 = vld [vmem:[#allocation7 + $0xc] sm:$0xf]
    %v155 = vld [vmem:[#allocation7 + $0x10] sm:$0xf]
    %v156 = vld [vmem:[#allocation7 + $0x14] sm:$0xf]
    %v157 = vld [vmem:[#allocation7 + $0x18] sm:$0xf]
    %v158 = vld [vmem:[#allocation7 + $0x1c] sm:$0xf]
    %v159 = vld [vmem:[#allocation7 + $0x20] sm:$0xf]
    %v160 = vld [vmem:[#allocation7 + $0x24] sm:$0xf]
    %v161 = vld [vmem:[#allocation7 + $0x28] sm:$0xf]
    %v162 = vld [vmem:[#allocation7 + $0x2c] sm:$0xf]
    %v163 = vld [vmem:[#allocation7 + $0x30] sm:$0xf]
    %v164 = vld [vmem:[#allocation7 + $0x34] sm:$0xf]
    %v165 = vld [vmem:[#allocation7 + $0x38] sm:$0xf]
    %v166 = vld [vmem:[#allocation7 + $0x3c] sm:$0xf]
    %v167 = vld [vmem:[%s4] sm:$0x1]
    %v169 = vperm.slane %v167, 0
    %v187 = vunpack.c.l.b16 %v151
    %v188 = vunpack.c.l.b16 %v152
    %v189 = vunpack.c.l.b16 %v153
    %v190 = vunpack.c.l.b16 %v154
    %v191 = vunpack.c.l.b16 %v155
    %v192 = vunpack.c.l.b16 %v156
    %v193 = vunpack.c.l.b16 %v157
    %v194 = vunpack.c.l.b16 %v158
    %v195 = vunpack.c.l.b16 %v159
    %v196 = vunpack.c.l.b16 %v160
    %v197 = vunpack.c.l.b16 %v161
    %v198 = vunpack.c.l.b16 %v162
    %v199 = vunpack.c.l.b16 %v163
    %v200 = vunpack.c.l.b16 %v164
    %v201 = vunpack.c.l.b16 %v165
    %v202 = vunpack.c.l.b16 %v166
    %v203 = vpack.c.b16 %v188, %v187
    %v204 = vpack.c.b16 %v190, %v189
    %v205 = vpack.c.b16 %v192, %v191
    %v206 = vpack.c.b16 %v194, %v193
    %v207 = vpack.c.b16 %v196, %v195
    %v208 = vpack.c.b16 %v198, %v197
    %v209 = vpack.c.b16 %v200, %v199
    %v210 = vpack.c.b16 %v202, %v201
    %219 = vmatpush.bf16.msra.mxu0 %v210
    %220 = vmatpush.bf16.msra.mxu0 %v209
    %221 = vmatpush.bf16.msra.mxu0 %v208
    %222 = vmatpush.bf16.msra.mxu0 %v207
    %223 = vmatpush.bf16.msra.mxu0 %v206
    %224 = vmatpush.bf16.msra.mxu0 %v205
    %225 = vmatpush.bf16.msra.mxu0 %v204
    %226 = vmatpush.bf16.msra.mxu0 %v203
    %227 = vmatmul.bf16.gmra.mxu0 %v150
    %v228 = vpop.f32.mrf.mxu0
    %v229 = vadd.f32 %v169, %v228
    %v230 = vpop.f32.mrf.mxu0
    %231 = vdwg.mxu0
    %v232 = vadd.f32 %v229, %v66
    %v233 = vmax.f32 %v232, 0.0
    %234 = vst [vmem:[#allocation8] sm:$0xff] %v233
    // Predicated region
    $region34: #{tpu_custom_call.1} parent=1 // pred_check
      _
    $region35: #{tpu_custom_call.1} parent=1 // pred_check_branch
      %236 = sbr.rel (0) target = $region37
    $region36: #{tpu_custom_call.1} parent=1 // pred_region
      %238 = vsyncadd [#allocation4], 0
      %s240 = sshll.u32 [#allocation8], 4
      %s241 = int_to_ptr.vmem [resolvable:$true] %s240
      %s242 = sshll.u32 %s5, 4
      %s243 = int_to_ptr.hbm [resolvable:$true] %s242
      %245 = dma.vmem_to_hbm [thread:$0]  %s241, 128, %s243, [#allocation4]
    $region37: #{tpu_custom_call.1} parent=1 // pred_fallthru
      _
    // Predicated region
    $region38: #{tpu_custom_call.1} parent=1 // pred_check
      _
    $region39: #{tpu_custom_call.1} parent=1 // pred_check_branch
      %247 = sbr.rel (0) target = $region41
    $region40: #{tpu_custom_call.1} parent=1 // pred_region
      %249 = dma.done [#allocation4], 128
    $region41: #{tpu_custom_call.1} parent=1 // pred_fallthru
      _
    %250 = vsyncpa [#allocation3], 1
    %251 = vsyncpa [#allocation6], 1
    %252 = vsyncpa [#allocation4], 1

</llo_original>
